<compile_context>
chip_gen: v7x
topology: tpu7x:2x2x1
jax: 0.10.0
libtpu: 0.0.40
codegen_flags: <defaults>
</compile_context>

<pallas_src>
import jax
import jax.numpy as jnp
from jax.experimental import pallas as pl
from jax.experimental.pallas import tpu as pltpu

BN_EPS = 1e-5
LANES = 128                 # TPU lane width; all channel dims padded to this.

# Packed-parameter row offsets (all sublane-tile aligned).
_W1_ROW = 0
_W2_ROW = 128
_G1_ROW, _B1_ROW, _G2_ROW, _B2_ROW = 256, 257, 258, 259
_PACK_ROWS = 264            # 256 + 8 (BN rows rounded up to a sublane tile)


def _bn_train(y, gamma, beta, inv_n):
    """Training-mode BatchNorm1d fused into one affine (single-pass stats)."""
    s = jnp.sum(y, axis=0, keepdims=True)
    sq = jnp.sum(y * y, axis=0, keepdims=True)
    mean = s * inv_n
    var = jnp.maximum(sq * inv_n - mean * mean, 0.0)      # biased variance
    scale = gamma * jax.lax.rsqrt(var + BN_EPS)
    shift = beta - mean * scale
    return y * scale + shift


def gcnresl_kernel(x_ref, p_ref, o_ref):
    inv_n = 1.0 / x_ref.shape[0]
    x = x_ref[...]                                        # (N, 128), lane-padded

    w1 = p_ref[_W1_ROW:_W1_ROW + LANES, :]                # (128, 128)
    w2 = p_ref[_W2_ROW:_W2_ROW + LANES, :]                # (128, 128)
    g1 = p_ref[_G1_ROW:_G1_ROW + 1, :]                    # (1, 128)
    b1 = p_ref[_B1_ROW:_B1_ROW + 1, :]
    g2 = p_ref[_G2_ROW:_G2_ROW + 1, :]
    b2 = p_ref[_B2_ROW:_B2_ROW + 1, :]

    # g1 -> bn1 -> relu
    h = jnp.dot(x, w1, preferred_element_type=jnp.float32)
    h = jnp.maximum(_bn_train(h, g1, b1, inv_n), 0.0)
    # g2 -> bn2 -> relu(. + residual)
    z = jnp.dot(h, w2, preferred_element_type=jnp.float32)
    z = _bn_train(z, g2, b2, inv_n)
    o_ref[...] = jnp.maximum(z + x, 0.0)


def pack_params(params):
    """Pack W1, W2 and both BatchNorm (gamma, beta) into one (264, 128) f32
    buffer.  Padded rows/lanes are zero, which keeps padded channels at
    exactly 0 through the whole forward pass (so they never leak into real
    channels and the residual stays correct)."""
    w1, w2 = params["w1"], params["w2"]
    g1, b1 = params["g1"], params["b1"]
    g2, b2 = params["g2"], params["b2"]
    ci, cm = w1.shape
    _, co = w2.shape
    buf = jnp.zeros((_PACK_ROWS, LANES), jnp.float32)
    buf = buf.at[_W1_ROW:_W1_ROW + ci, :cm].set(w1)
    buf = buf.at[_W2_ROW:_W2_ROW + cm, :co].set(w2)
    buf = buf.at[_G1_ROW, :cm].set(g1)
    buf = buf.at[_B1_ROW, :cm].set(b1)
    buf = buf.at[_G2_ROW, :co].set(g2)
    buf = buf.at[_B2_ROW, :co].set(b2)
    return buf


@jax.jit
def gcnresl_forward(x, packed):
    n, c = x.shape
    x_pad = jnp.pad(x.astype(jnp.float32), ((0, 0), (0, LANES - c)))

    vmem = pl.BlockSpec(memory_space=pltpu.MemorySpace.VMEM)
    cost = pl.CostEstimate(
        flops=2 * 2 * n * LANES * LANES + 12 * n * LANES,
        transcendentals=0,
        bytes_accessed=(x_pad.size + packed.size + n * LANES) * 4,
    )
    out = pl.pallas_call(
        gcnresl_kernel,
        out_shape=jax.ShapeDtypeStruct((n, LANES), jnp.float32),
        in_specs=[vmem, vmem],
        out_specs=vmem,
        compiler_params=pltpu.CompilerParams(vmem_limit_bytes=64 * 1024 * 1024),
        cost_estimate=cost,
    )(x_pad, packed)
    return out[:, :c]


def reference_forward(x, params):
    """Pure-JAX reference mirroring the PyTorch GCNResL forward."""
    def bn(y, gamma, beta):
        mean = jnp.mean(y, axis=0, keepdims=True)
        var = jnp.mean((y - mean) ** 2, axis=0, keepdims=True)
        return (y - mean) * jax.lax.rsqrt(var + BN_EPS) * gamma + beta

    h = jnp.maximum(bn(x @ params["w1"], params["g1"], params["b1"]), 0.0)
    z = bn(h @ params["w2"], params["g2"], params["b2"])
    return jnp.maximum(z + x, 0.0)


if __name__ == "__main__":
    key = jax.random.PRNGKey(0)
    k_x, k_p = jax.random.split(key)

    N = 64
    CHANNELS = 8                       # GCNResL default channels
    INNER = 2 * CHANNELS               # inner_channels = channels * 2

    x = jax.random.normal(k_x, (N, CHANNELS), jnp.float32)

    # es (edge index) is accepted by the PyTorch forward but never used
    # (gnn.Linear only, no message passing), so it is not a kernel input.
    es = jnp.stack(
        [jnp.arange(N, dtype=jnp.int32), (jnp.arange(N, dtype=jnp.int32) + 1) % N]
    )
    del es

    ks = jax.random.split(k_p, 6)
    params = {
        "w1": 0.2 * jax.random.normal(ks[0], (CHANNELS, INNER), jnp.float32),
        "g1": 1.0 + 0.1 * jax.random.normal(ks[1], (INNER,), jnp.float32),
        "b1": 0.1 * jax.random.normal(ks[2], (INNER,), jnp.float32),
        "w2": 0.2 * jax.random.normal(ks[3], (INNER, CHANNELS), jnp.float32),
        "g2": 1.0 + 0.1 * jax.random.normal(ks[4], (CHANNELS,), jnp.float32),
        "b2": 0.1 * jax.random.normal(ks[5], (CHANNELS,), jnp.float32),
    }

    packed = pack_params(params)          # host-side, one-time packing

    out = jax.block_until_ready(gcnresl_forward(x, packed))

    ref = reference_forward(x, params)
    assert out.shape == (N, CHANNELS)
    assert jnp.allclose(out, ref, atol=1e-5, rtol=1e-5), "mismatch vs reference"

    print("KERNEL_OK")
</pallas_src>

<mosaic_0001>
module attributes {stable_mosaic.version = 11 : i64} {
  func.func @gcnresl_kernel(%arg0: memref<64x128xf32, #tpu.memory_space<vmem>>, %arg1: memref<264x128xf32, #tpu.memory_space<vmem>>, %arg2: memref<64x128xf32, #tpu.memory_space<vmem>>) attributes {dimension_semantics = [], scalar_prefetch = 0 : i64, scratch_operands = 0 : i64, tpu.core_type = #tpu.core_type<tc>} {
    %c0 = arith.constant 0 : index
    %c0_0 = arith.constant 0 : index
    %0 = vector.load %arg0[%c0, %c0_0] : memref<64x128xf32, #tpu.memory_space<vmem>>, vector<64x128xf32>
    %c0_1 = arith.constant 0 : index
    %c0_2 = arith.constant 0 : index
    %1 = vector.load %arg1[%c0_1, %c0_2] : memref<264x128xf32, #tpu.memory_space<vmem>>, vector<128x128xf32>
    %c128 = arith.constant 128 : index
    %c0_3 = arith.constant 0 : index
    %2 = vector.load %arg1[%c128, %c0_3] : memref<264x128xf32, #tpu.memory_space<vmem>>, vector<128x128xf32>
    %c256 = arith.constant 256 : index
    %c0_4 = arith.constant 0 : index
    %3 = vector.load %arg1[%c256, %c0_4] : memref<264x128xf32, #tpu.memory_space<vmem>>, vector<1x128xf32>
    %c257 = arith.constant 257 : index
    %c0_5 = arith.constant 0 : index
    %4 = vector.load %arg1[%c257, %c0_5] : memref<264x128xf32, #tpu.memory_space<vmem>>, vector<1x128xf32>
    %c258 = arith.constant 258 : index
    %c0_6 = arith.constant 0 : index
    %5 = vector.load %arg1[%c258, %c0_6] : memref<264x128xf32, #tpu.memory_space<vmem>>, vector<1x128xf32>
    %c259 = arith.constant 259 : index
    %c0_7 = arith.constant 0 : index
    %6 = vector.load %arg1[%c259, %c0_7] : memref<264x128xf32, #tpu.memory_space<vmem>>, vector<1x128xf32>
    %cst = arith.constant dense<0.000000e+00> : vector<64x128xf32>
    %7 = tpu.matmul %0, %1, %cst {dimension_numbers = #tpu.dot_dimension_numbers<[1], [0], [0], [1], [0, 0, 1, 1], [], []>} : vector<64x128xf32>, vector<128x128xf32>, vector<64x128xf32> -> vector<64x128xf32>
    %cst_8 = arith.constant dense<0.000000e+00> : vector<128xf32>
    %8 = vector.multi_reduction <add>, %7, %cst_8 [0] : vector<64x128xf32> to vector<128xf32>
    %9 = vector.shape_cast %8 : vector<128xf32> to vector<1x128xf32>
    %10 = arith.mulf %7, %7 : vector<64x128xf32>
    %cst_9 = arith.constant dense<0.000000e+00> : vector<128xf32>
    %11 = vector.multi_reduction <add>, %10, %cst_9 [0] : vector<64x128xf32> to vector<128xf32>
    %12 = vector.shape_cast %11 : vector<128xf32> to vector<1x128xf32>
    %cst_10 = arith.constant 1.562500e-02 : f32
    %13 = vector.broadcast %cst_10 : f32 to vector<1x128xf32>
    %14 = arith.mulf %9, %13 : vector<1x128xf32>
    %cst_11 = arith.constant 1.562500e-02 : f32
    %15 = vector.broadcast %cst_11 : f32 to vector<1x128xf32>
    %16 = arith.mulf %12, %15 : vector<1x128xf32>
    %17 = arith.mulf %14, %14 : vector<1x128xf32>
    %18 = arith.subf %16, %17 : vector<1x128xf32>
    %cst_12 = arith.constant 0.000000e+00 : f32
    %19 = vector.broadcast %cst_12 : f32 to vector<1x128xf32>
    %20 = arith.maximumf %18, %19 : vector<1x128xf32>
    %cst_13 = arith.constant 9.99999974E-6 : f32
    %21 = vector.broadcast %cst_13 : f32 to vector<1x128xf32>
    %22 = arith.addf %20, %21 : vector<1x128xf32>
    %23 = math.rsqrt %22 : vector<1x128xf32>
    %24 = arith.mulf %3, %23 : vector<1x128xf32>
    %25 = arith.mulf %14, %24 : vector<1x128xf32>
    %26 = arith.subf %4, %25 : vector<1x128xf32>
    %27 = vector.broadcast %24 : vector<1x128xf32> to vector<64x128xf32>
    %28 = arith.mulf %7, %27 : vector<64x128xf32>
    %29 = vector.broadcast %26 : vector<1x128xf32> to vector<64x128xf32>
    %30 = arith.addf %28, %29 : vector<64x128xf32>
    %cst_14 = arith.constant 0.000000e+00 : f32
    %31 = vector.broadcast %cst_14 : f32 to vector<64x128xf32>
    %32 = arith.maximumf %30, %31 : vector<64x128xf32>
    %cst_15 = arith.constant dense<0.000000e+00> : vector<64x128xf32>
    %33 = tpu.matmul %32, %2, %cst_15 {dimension_numbers = #tpu.dot_dimension_numbers<[1], [0], [0], [1], [0, 0, 1, 1], [], []>} : vector<64x128xf32>, vector<128x128xf32>, vector<64x128xf32> -> vector<64x128xf32>
    %cst_16 = arith.constant dense<0.000000e+00> : vector<128xf32>
    %34 = vector.multi_reduction <add>, %33, %cst_16 [0] : vector<64x128xf32> to vector<128xf32>
    %35 = vector.shape_cast %34 : vector<128xf32> to vector<1x128xf32>
    %36 = arith.mulf %33, %33 : vector<64x128xf32>
    %cst_17 = arith.constant dense<0.000000e+00> : vector<128xf32>
    %37 = vector.multi_reduction <add>, %36, %cst_17 [0] : vector<64x128xf32> to vector<128xf32>
    %38 = vector.shape_cast %37 : vector<128xf32> to vector<1x128xf32>
    %cst_18 = arith.constant 1.562500e-02 : f32
    %39 = vector.broadcast %cst_18 : f32 to vector<1x128xf32>
    %40 = arith.mulf %35, %39 : vector<1x128xf32>
    %cst_19 = arith.constant 1.562500e-02 : f32
    %41 = vector.broadcast %cst_19 : f32 to vector<1x128xf32>
    %42 = arith.mulf %38, %41 : vector<1x128xf32>
    %43 = arith.mulf %40, %40 : vector<1x128xf32>
    %44 = arith.subf %42, %43 : vector<1x128xf32>
    %cst_20 = arith.constant 0.000000e+00 : f32
    %45 = vector.broadcast %cst_20 : f32 to vector<1x128xf32>
    %46 = arith.maximumf %44, %45 : vector<1x128xf32>
    %cst_21 = arith.constant 9.99999974E-6 : f32
    %47 = vector.broadcast %cst_21 : f32 to vector<1x128xf32>
    %48 = arith.addf %46, %47 : vector<1x128xf32>
    %49 = math.rsqrt %48 : vector<1x128xf32>
    %50 = arith.mulf %5, %49 : vector<1x128xf32>
    %51 = arith.mulf %40, %50 : vector<1x128xf32>
    %52 = arith.subf %6, %51 : vector<1x128xf32>
    %53 = vector.broadcast %50 : vector<1x128xf32> to vector<64x128xf32>
    %54 = arith.mulf %33, %53 : vector<64x128xf32>
    %55 = vector.broadcast %52 : vector<1x128xf32> to vector<64x128xf32>
    %56 = arith.addf %54, %55 : vector<64x128xf32>
    %57 = arith.addf %56, %0 : vector<64x128xf32>
    %cst_22 = arith.constant 0.000000e+00 : f32
    %58 = vector.broadcast %cst_22 : f32 to vector<64x128xf32>
    %59 = arith.maximumf %57, %58 : vector<64x128xf32>
    %c0_23 = arith.constant 0 : index
    %c0_24 = arith.constant 0 : index
    %60 = vector.load %arg2[%c0_23, %c0_24] : memref<64x128xf32, #tpu.memory_space<vmem>>, vector<64x128xf32>
    tpu.vector_store %arg2[%c0_23, %c0_24], %59 {strides = array<i32>} : memref<64x128xf32, #tpu.memory_space<vmem>>, vector<64x128xf32>,
    return
  }
}

</mosaic_0001>

<llo_original>
// kernel: gcnresl_forward.1
$region0: #{gcnresl_forward.1}
  #allocation0 [shape = 'u32[]', space=smem, size = 0x4, offset = 0x4, fixed_abs, tag = 'smem constant byte address 0x4 - core index']
  #allocation1 [shape = 'u32[144,128]{1,0:T(1,128)}', space=vmem, size = 0x12000, scoped, tag = 'internal scratch']
  %s0 = inlined_call_operand.hbm [shape: f32[64,128], index: 0, kind: input, shape index: {}]
  %s1 = inlined_call_operand.hbm [shape: f32[264,128], index: 1, kind: input, shape index: {}]
  %s2 = inlined_call_operand.hbm [shape: f32[64,128], index: 2, kind: output, shape index: {}]
  %s3 = sld [smem:[#allocation0]]
  $region26: #{gcnresl_forward.1} parent=0
    _
  %s5 = ssub.s32 1, %s3
  %s6 = scalar_select 0, %s5, %s3
  $region1: #{gcnresl_forward.1} parent=0
    #allocation2 [shape = 'u8[32768]{0}', space=vmem, size = 0x8000, scoped, tag = 'input window, operand 0, single buffered']
    #allocation3 [shape = 's32[1]{0}', space=sflag, size = 0x4, scoped, tag = 'scoped memory for gcnresl_forward.1']
    #allocation4 [shape = 's32[1]{0}', space=sflag, size = 0x4, scoped, tag = 'scoped memory for gcnresl_forward.1']
    #allocation5 [shape = 'u8[135168]{0}', space=vmem, size = 0x21000, scoped, tag = 'input window, operand 1, single buffered']
    #allocation6 [shape = 's32[1]{0}', space=sflag, size = 0x4, scoped, tag = 'scoped memory for gcnresl_forward.1']
    #allocation7 [shape = 'u8[32768]{0}', space=vmem, size = 0x8000, scoped, tag = 'output window, operand 0, single buffered']
    %7 = vsyncpa [#allocation3], 0
    %8 = vsyncpa [#allocation6], 0
    %9 = vsyncpa [#allocation4], 0
    // Predicated region
    $region2: #{gcnresl_forward.1} parent=1 // pred_check
      _
    $region3: #{gcnresl_forward.1} parent=1 // pred_check_branch
      %11 = sbr.rel (0) target = $region5
    $region4: #{gcnresl_forward.1} parent=1 // pred_region
      %s13 = ssub.s32 1024, 1024
      %14 = vsyncadd [#allocation3], %s13
      %s15 = sshll.u32 [#allocation2], 4
      %s16 = int_to_ptr.vmem [resolvable:$true] %s15
      %21 = dma.hbm_to_vmem [thread:$0]  %s0, 1024, %s16, [#allocation3], 128, 128, 8
    $region5: #{gcnresl_forward.1} parent=1 // pred_fallthru
      _
    // Predicated region
    $region6: #{gcnresl_forward.1} parent=1 // pred_check
      _
    $region7: #{gcnresl_forward.1} parent=1 // pred_check_branch
      %23 = sbr.rel (0) target = $region9
    $region8: #{gcnresl_forward.1} parent=1 // pred_region
      %s25 = ssub.s32 4224, 4224
      %26 = vsyncadd [#allocation6], %s25
      %s27 = sshll.u32 [#allocation5], 4
      %s28 = int_to_ptr.vmem [resolvable:$true] %s27
      %33 = dma.hbm_to_vmem [thread:$0]  %s1, 4224, %s28, [#allocation6], 128, 128, 8
    $region9: #{gcnresl_forward.1} parent=1 // pred_fallthru
      _
    // Predicated region
    $region10: #{gcnresl_forward.1} parent=1 // pred_check
      _
    $region11: #{gcnresl_forward.1} parent=1 // pred_check_branch
      %35 = sbr.rel (0) target = $region13
    $region12: #{gcnresl_forward.1} parent=1 // pred_region
      %36 = dma.done [#allocation3], 1024
    $region13: #{gcnresl_forward.1} parent=1 // pred_fallthru
      _
    // Predicated region
    $region14: #{gcnresl_forward.1} parent=1 // pred_check
      _
    $region15: #{gcnresl_forward.1} parent=1 // pred_check_branch
      %38 = sbr.rel (0) target = $region17
    $region16: #{gcnresl_forward.1} parent=1 // pred_region
      %39 = dma.done [#allocation6], 4224
    $region17: #{gcnresl_forward.1} parent=1 // pred_fallthru
      _
    %v40 = vld [vmem:[#allocation2] sm:$0xff]
    %v41 = vld [vmem:[#allocation2 + $0x8] sm:$0xff]
    %v42 = vld [vmem:[#allocation2 + $0x10] sm:$0xff]
    %v43 = vld [vmem:[#allocation2 + $0x18] sm:$0xff]
    %v44 = vld [vmem:[#allocation2 + $0x20] sm:$0xff]
    %v45 = vld [vmem:[#allocation2 + $0x28] sm:$0xff]
    %v46 = vld [vmem:[#allocation2 + $0x30] sm:$0xff]
    %v47 = vld [vmem:[#allocation2 + $0x38] sm:$0xff]
    %v48 = vld [vmem:[#allocation5] sm:$0xff]
    %v49 = vld [vmem:[#allocation5 + $0x8] sm:$0xff]
    %v50 = vld [vmem:[#allocation5 + $0x10] sm:$0xff]
    %v51 = vld [vmem:[#allocation5 + $0x18] sm:$0xff]
    %v52 = vld [vmem:[#allocation5 + $0x20] sm:$0xff]
    %v53 = vld [vmem:[#allocation5 + $0x28] sm:$0xff]
    %v54 = vld [vmem:[#allocation5 + $0x30] sm:$0xff]
    %v55 = vld [vmem:[#allocation5 + $0x38] sm:$0xff]
    %v56 = vld [vmem:[#allocation5 + $0x40] sm:$0xff]
    %v57 = vld [vmem:[#allocation5 + $0x48] sm:$0xff]
    %v58 = vld [vmem:[#allocation5 + $0x50] sm:$0xff]
    %v59 = vld [vmem:[#allocation5 + $0x58] sm:$0xff]
    %v60 = vld [vmem:[#allocation5 + $0x60] sm:$0xff]
    %v61 = vld [vmem:[#allocation5 + $0x68] sm:$0xff]
    %v62 = vld [vmem:[#allocation5 + $0x70] sm:$0xff]
    %v63 = vld [vmem:[#allocation5 + $0x78] sm:$0xff]
    %v64 = vld [vmem:[#allocation5 + $0x80] sm:$0xff]
    %v65 = vld [vmem:[#allocation5 + $0x88] sm:$0xff]
    %v66 = vld [vmem:[#allocation5 + $0x90] sm:$0xff]
    %v67 = vld [vmem:[#allocation5 + $0x98] sm:$0xff]
    %v68 = vld [vmem:[#allocation5 + $0xa0] sm:$0xff]
    %v69 = vld [vmem:[#allocation5 + $0xa8] sm:$0xff]
    %v70 = vld [vmem:[#allocation5 + $0xb0] sm:$0xff]
    %v71 = vld [vmem:[#allocation5 + $0xb8] sm:$0xff]
    %v72 = vld [vmem:[#allocation5 + $0xc0] sm:$0xff]
    %v73 = vld [vmem:[#allocation5 + $0xc8] sm:$0xff]
    %v74 = vld [vmem:[#allocation5 + $0xd0] sm:$0xff]
    %v75 = vld [vmem:[#allocation5 + $0xd8] sm:$0xff]
    %v76 = vld [vmem:[#allocation5 + $0xe0] sm:$0xff]
    %v77 = vld [vmem:[#allocation5 + $0xe8] sm:$0xff]
    %v78 = vld [vmem:[#allocation5 + $0xf0] sm:$0xff]
    %v79 = vld [vmem:[#allocation5 + $0xf8] sm:$0xff]
    %v80 = vld [vmem:[#allocation5 + $0x100] sm:$0x1]
    %v81 = vld [vmem:[#allocation5 + $0x101] sm:$0x1]
    %v82 = vld [vmem:[#allocation5 + $0x102] sm:$0x1]
    %v83 = vld [vmem:[#allocation5 + $0x103] sm:$0x1]
    %84 = vmatprep.subr.mxu0 0.0
    %85 = vmatpush1.msra.mxu0 %v48
    %86 = vmatprep.subr.mxu0 0.0
    %87 = vmatpush1.msra.mxu0 %v49
    %88 = vmatprep.subr.mxu0 0.0
    %89 = vmatpush1.msra.mxu0 %v50
    %90 = vmatprep.subr.mxu0 0.0
    %91 = vmatpush1.msra.mxu0 %v51
    %92 = vmatprep.subr.mxu0 0.0
    %93 = vmatpush1.msra.mxu0 %v52
    %94 = vmatprep.subr.mxu0 0.0
    %95 = vmatpush1.msra.mxu0 %v53
    %96 = vmatprep.subr.mxu0 0.0
    %97 = vmatpush1.msra.mxu0 %v54
    %98 = vmatprep.subr.mxu0 0.0
    %99 = vmatpush1.msra.mxu0 %v55
    %100 = vmatprep.subr.mxu0 0.0
    %101 = vmatpush1.msra.mxu0 %v56
    %102 = vmatprep.subr.mxu0 0.0
    %103 = vmatpush1.msra.mxu0 %v57
    %104 = vmatprep.subr.mxu0 0.0
    %105 = vmatpush1.msra.mxu0 %v58
    %106 = vmatprep.subr.mxu0 0.0
    %107 = vmatpush1.msra.mxu0 %v59
    %108 = vmatprep.subr.mxu0 0.0
    %109 = vmatpush1.msra.mxu0 %v60
    %110 = vmatprep.subr.mxu0 0.0
    %111 = vmatpush1.msra.mxu0 %v61
    %112 = vmatprep.subr.mxu0 0.0
    %113 = vmatpush1.msra.mxu0 %v62
    %114 = vmatprep.subr.mxu0 0.0
    %115 = vmatpush1.msra.mxu0 %v63
    %116 = vmatprep.subr.mxu0 0.0
    %117 = vmatpush1.msra.mxu0 0.0
    %118 = vmatprep.subr.mxu0 0.0
    %119 = vmatpush1.msra.mxu0 0.0
    %120 = vmatprep.subr.mxu0 0.0
    %121 = vmatpush1.msra.mxu0 0.0
    %122 = vmatprep.subr.mxu0 0.0
    %123 = vmatpush1.msra.mxu0 0.0
    %124 = vmatprep.subr.mxu0 0.0
    %125 = vmatpush1.msra.mxu0 0.0
    %126 = vmatprep.subr.mxu0 0.0
    %127 = vmatpush1.msra.mxu0 0.0
    %128 = vmatprep.subr.mxu0 0.0
    %129 = vmatpush1.msra.mxu0 0.0
    %130 = vmatprep.subr.mxu0 0.0
    %131 = vmatpush1.msra.mxu0 0.0
    %132 = vmatprep.subr.mxu0 0.0
    %133 = vmatpush1.msra.mxu0 0.0
    %134 = vmatprep.subr.mxu0 0.0
    %135 = vmatpush1.msra.mxu0 0.0
    %136 = vmatprep.subr.mxu0 0.0
    %137 = vmatpush1.msra.mxu0 0.0
    %138 = vmatprep.subr.mxu0 0.0
    %139 = vmatpush1.msra.mxu0 0.0
    %140 = vmatprep.subr.mxu0 0.0
    %141 = vmatpush1.msra.mxu0 0.0
    %142 = vmatprep.subr.mxu0 0.0
    %143 = vmatpush1.msra.mxu0 0.0
    %144 = vmatprep.subr.mxu0 0.0
    %145 = vmatpush1.msra.mxu0 0.0
    %146 = vmatprep.subr.mxu0 0.0
    %147 = vmatpush1.msra.mxu0 0.0
    %148 = vmatprep.mubr.f32.mxu0 0.0
    %149 = vmatmul.mubr.f32.gmra.mrb[0].mxu0 %v40
    %v150 = vpop.f32.mrb[0].mxu0
    %v151 = vadd.f32 0.0, %v150
    %v152 = vpop.f32.mrb[0].mxu0
    %153 = vmatprep.mubr.f32.mxu0 0.0
    %154 = vmatmul.mubr.f32.gmra.mrb[0].mxu0 %v41
    %v155 = vpop.f32.mrb[0].mxu0
    %v156 = vadd.f32 0.0, %v155
    %v157 = vpop.f32.mrb[0].mxu0
    %158 = vmatprep.mubr.f32.mxu0 0.0
    %159 = vmatmul.mubr.f32.gmra.mrb[0].mxu0 %v42
    %v160 = vpop.f32.mrb[0].mxu0
    %v161 = vadd.f32 0.0, %v160
    %v162 = vpop.f32.mrb[0].mxu0
    %163 = vmatprep.mubr.f32.mxu0 0.0
    %164 = vmatmul.mubr.f32.gmra.mrb[0].mxu0 %v43
    %v165 = vpop.f32.mrb[0].mxu0
    %v166 = vadd.f32 0.0, %v165
    %v167 = vpop.f32.mrb[0].mxu0
    %168 = vmatprep.mubr.f32.mxu0 0.0
    %169 = vmatmul.mubr.f32.gmra.mrb[0].mxu0 %v44
    %v170 = vpop.f32.mrb[0].mxu0
    %v171 = vadd.f32 0.0, %v170
    %v172 = vpop.f32.mrb[0].mxu0
    %173 = vmatprep.mubr.f32.mxu0 0.0
    %174 = vmatmul.mubr.f32.gmra.mrb[0].mxu0 %v45
    %v175 = vpop.f32.mrb[0].mxu0
    %v176 = vadd.f32 0.0, %v175
    %v177 = vpop.f32.mrb[0].mxu0
    %178 = vmatprep.mubr.f32.mxu0 0.0
    %179 = vmatmul.mubr.f32.gmra.mrb[0].mxu0 %v46
    %v180 = vpop.f32.mrb[0].mxu0
    %v181 = vadd.f32 0.0, %v180
    %v182 = vpop.f32.mrb[0].mxu0
    %183 = vmatprep.mubr.f32.mxu0 0.0
    %184 = vmatmul.mubr.f32.gmra.mrb[0].mxu0 %v47
    %v185 = vpop.f32.mrb[0].mxu0
    %v186 = vadd.f32 0.0, %v185
    %v187 = vpop.f32.mrb[0].mxu0
    %188 = vdwg.mxu0
    %v189 = vadd.f32 %v151, %v156
    %v190 = vadd.f32 %v189, %v161
    %v191 = vadd.f32 %v190, %v166
    %v192 = vadd.f32 %v191, %v171
    %v193 = vadd.f32 %v192, %v176
    %v194 = vadd.f32 %v193, %v181
    %v195 = vadd.f32 %v194, %v186
    %v196 = vrot.slane %v195, 4
    %v197 = vadd.f32 %v195, %v196
    %v198 = vrot.slane %v197, 2
    %v199 = vadd.f32 %v197, %v198
    %v200 = vrot.slane %v199, 1
    %v201 = vadd.f32 %v199, %v200
    %v202 = vmul.f32 %v151, %v151
    %v203 = vmul.f32 %v156, %v156
    %v204 = vmul.f32 %v161, %v161
    %v205 = vmul.f32 %v166, %v166
    %v206 = vmul.f32 %v171, %v171
    %v207 = vmul.f32 %v176, %v176
    %v208 = vmul.f32 %v181, %v181
    %v209 = vmul.f32 %v186, %v186
    %v210 = vadd.f32 %v202, %v203
    %v211 = vadd.f32 %v210, %v204
    %v212 = vadd.f32 %v211, %v205
    %v213 = vadd.f32 %v212, %v206
    %v214 = vadd.f32 %v213, %v207
    %v215 = vadd.f32 %v214, %v208
    %v216 = vadd.f32 %v215, %v209
    %v217 = vrot.slane %v216, 4
    %v218 = vadd.f32 %v216, %v217
    %v219 = vrot.slane %v218, 2
    %v220 = vadd.f32 %v218, %v219
    %v221 = vrot.slane %v220, 1
    %v222 = vadd.f32 %v220, %v221
    %v223 = vmul.f32 %v201, 0.015625
    %v224 = vmul.f32 %v222, 0.015625
    %v225 = vmul.f32 %v223, %v223
    %v226 = vsub.f32 %v224, %v225
    %v227 = vmax.f32 %v226, 0.0
    %v228 = vadd.f32 %v227, 1e-05
    %v229 = vrsqrt.pop %v228
    %v230 = vmul.f32 %v80, %v229
    %v231 = vmul.f32 %v223, %v230
    %v232 = vsub.f32 %v81, %v231
    %v233 = vlaneseq
    %v234 = vshrl.u32 %v233, 7
    %v235 = vsub.s32 0, %v234
    %v236 = vrot.slane %v230, %v235
    %v237 = vmul.f32 %v151, %v236
    %v238 = vmul.f32 %v156, %v236
    %v239 = vmul.f32 %v161, %v236
    %v240 = vmul.f32 %v166, %v236
    %v241 = vmul.f32 %v171, %v236
    %v242 = vmul.f32 %v176, %v236
    %v243 = vmul.f32 %v181, %v236
    %v244 = vmul.f32 %v186, %v236
    %v245 = vlaneseq
    %v246 = vshrl.u32 %v245, 7
    %v247 = vsub.s32 0, %v246
    %v248 = vrot.slane %v232, %v247
    %v249 = vadd.f32 %v237, %v248
    %v250 = vadd.f32 %v238, %v248
    %v251 = vadd.f32 %v239, %v248
    %v252 = vadd.f32 %v240, %v248
    %v253 = vadd.f32 %v241, %v248
    %v254 = vadd.f32 %v242, %v248
    %v255 = vadd.f32 %v243, %v248
    %v256 = vadd.f32 %v244, %v248
    %v257 = vmax.f32 %v249, 0.0
    %v258 = vmax.f32 %v250, 0.0
    %v259 = vmax.f32 %v251, 0.0
    %v260 = vmax.f32 %v252, 0.0
    %v261 = vmax.f32 %v253, 0.0
    %v262 = vmax.f32 %v254, 0.0
    %v263 = vmax.f32 %v255, 0.0
    %v264 = vmax.f32 %v256, 0.0
    %265 = vmatprep.subr.mxu0 0.0
    %266 = vmatpush1.msra.mxu0 %v64
    %267 = vmatprep.subr.mxu0 0.0
    %268 = vmatpush1.msra.mxu0 %v65
    %269 = vmatprep.subr.mxu0 0.0
    %270 = vmatpush1.msra.mxu0 %v66
    %271 = vmatprep.subr.mxu0 0.0
    %272 = vmatpush1.msra.mxu0 %v67
    %273 = vmatprep.subr.mxu0 0.0
    %274 = vmatpush1.msra.mxu0 %v68
    %275 = vmatprep.subr.mxu0 0.0
    %276 = vmatpush1.msra.mxu0 %v69
    %277 = vmatprep.subr.mxu0 0.0
    %278 = vmatpush1.msra.mxu0 %v70
    %279 = vmatprep.subr.mxu0 0.0
    %280 = vmatpush1.msra.mxu0 %v71
    %281 = vmatprep.subr.mxu0 0.0
    %282 = vmatpush1.msra.mxu0 %v72
    %283 = vmatprep.subr.mxu0 0.0
    %284 = vmatpush1.msra.mxu0 %v73
    %285 = vmatprep.subr.mxu0 0.0
    %286 = vmatpush1.msra.mxu0 %v74
    %287 = vmatprep.subr.mxu0 0.0
    %288 = vmatpush1.msra.mxu0 %v75
    %289 = vmatprep.subr.mxu0 0.0
    %290 = vmatpush1.msra.mxu0 %v76
    %291 = vmatprep.subr.mxu0 0.0
    %292 = vmatpush1.msra.mxu0 %v77
    %293 = vmatprep.subr.mxu0 0.0
    %294 = vmatpush1.msra.mxu0 %v78
    %295 = vmatprep.subr.mxu0 0.0
    %296 = vmatpush1.msra.mxu0 %v79
    %297 = vmatprep.subr.mxu0 0.0
    %298 = vmatpush1.msra.mxu0 0.0
    %299 = vmatprep.subr.mxu0 0.0
    %300 = vmatpush1.msra.mxu0 0.0
    %301 = vmatprep.subr.mxu0 0.0
    %302 = vmatpush1.msra.mxu0 0.0
    %303 = vmatprep.subr.mxu0 0.0
    %304 = vmatpush1.msra.mxu0 0.0
    %305 = vmatprep.subr.mxu0 0.0
    %306 = vmatpush1.msra.mxu0 0.0
    %307 = vmatprep.subr.mxu0 0.0
    %308 = vmatpush1.msra.mxu0 0.0
    %309 = vmatprep.subr.mxu0 0.0
    %310 = vmatpush1.msra.mxu0 0.0
    %311 = vmatprep.subr.mxu0 0.0
    %312 = vmatpush1.msra.mxu0 0.0
    %313 = vmatprep.subr.mxu0 0.0
    %314 = vmatpush1.msra.mxu0 0.0
    %315 = vmatprep.subr.mxu0 0.0
    %316 = vmatpush1.msra.mxu0 0.0
    %317 = vmatprep.subr.mxu0 0.0
    %318 = vmatpush1.msra.mxu0 0.0
    %319 = vmatprep.subr.mxu0 0.0
    %320 = vmatpush1.msra.mxu0 0.0
    %321 = vmatprep.subr.mxu0 0.0
    %322 = vmatpush1.msra.mxu0 0.0
    %323 = vmatprep.subr.mxu0 0.0
    %324 = vmatpush1.msra.mxu0 0.0
    %325 = vmatprep.subr.mxu0 0.0
    %326 = vmatpush1.msra.mxu0 0.0
    %327 = vmatprep.subr.mxu0 0.0
    %328 = vmatpush1.msra.mxu0 0.0
    %329 = vmatprep.mubr.f32.mxu0 0.0
    %330 = vmatmul.mubr.f32.gmra.mrb[0].mxu0 %v257
    %v331 = vpop.f32.mrb[0].mxu0
    %v332 = vadd.f32 0.0, %v331
    %v333 = vpop.f32.mrb[0].mxu0
    %334 = vmatprep.mubr.f32.mxu0 0.0
    %335 = vmatmul.mubr.f32.gmra.mrb[0].mxu0 %v258
    %v336 = vpop.f32.mrb[0].mxu0
    %v337 = vadd.f32 0.0, %v336
    %v338 = vpop.f32.mrb[0].mxu0
    %339 = vmatprep.mubr.f32.mxu0 0.0
    %340 = vmatmul.mubr.f32.gmra.mrb[0].mxu0 %v259
    %v341 = vpop.f32.mrb[0].mxu0
    %v342 = vadd.f32 0.0, %v341
    %v343 = vpop.f32.mrb[0].mxu0
    %344 = vmatprep.mubr.f32.mxu0 0.0
    %345 = vmatmul.mubr.f32.gmra.mrb[0].mxu0 %v260
    %v346 = vpop.f32.mrb[0].mxu0
    %v347 = vadd.f32 0.0, %v346
    %v348 = vpop.f32.mrb[0].mxu0
    %349 = vmatprep.mubr.f32.mxu0 0.0
    %350 = vmatmul.mubr.f32.gmra.mrb[0].mxu0 %v261
    %v351 = vpop.f32.mrb[0].mxu0
    %v352 = vadd.f32 0.0, %v351
    %v353 = vpop.f32.mrb[0].mxu0
    %354 = vmatprep.mubr.f32.mxu0 0.0
    %355 = vmatmul.mubr.f32.gmra.mrb[0].mxu0 %v262
    %v356 = vpop.f32.mrb[0].mxu0
    %v357 = vadd.f32 0.0, %v356
    %v358 = vpop.f32.mrb[0].mxu0
    %359 = vmatprep.mubr.f32.mxu0 0.0
    %360 = vmatmul.mubr.f32.gmra.mrb[0].mxu0 %v263
    %v361 = vpop.f32.mrb[0].mxu0
    %v362 = vadd.f32 0.0, %v361
    %v363 = vpop.f32.mrb[0].mxu0
    %364 = vmatprep.mubr.f32.mxu0 0.0
    %365 = vmatmul.mubr.f32.gmra.mrb[0].mxu0 %v264
    %v366 = vpop.f32.mrb[0].mxu0
    %v367 = vadd.f32 0.0, %v366
    %v368 = vpop.f32.mrb[0].mxu0
    %369 = vdwg.mxu0
    %v370 = vadd.f32 %v332, %v337
    %v371 = vadd.f32 %v370, %v342
    %v372 = vadd.f32 %v371, %v347
    %v373 = vadd.f32 %v372, %v352
    %v374 = vadd.f32 %v373, %v357
    %v375 = vadd.f32 %v374, %v362
    %v376 = vadd.f32 %v375, %v367
    %v377 = vrot.slane %v376, 4
    %v378 = vadd.f32 %v376, %v377
    %v379 = vrot.slane %v378, 2
    %v380 = vadd.f32 %v378, %v379
    %v381 = vrot.slane %v380, 1
    %v382 = vadd.f32 %v380, %v381
    %v383 = vmul.f32 %v332, %v332
    %v384 = vmul.f32 %v337, %v337
    %v385 = vmul.f32 %v342, %v342
    %v386 = vmul.f32 %v347, %v347
    %v387 = vmul.f32 %v352, %v352
    %v388 = vmul.f32 %v357, %v357
    %v389 = vmul.f32 %v362, %v362
    %v390 = vmul.f32 %v367, %v367
    %v391 = vadd.f32 %v383, %v384
    %v392 = vadd.f32 %v391, %v385
    %v393 = vadd.f32 %v392, %v386
    %v394 = vadd.f32 %v393, %v387
    %v395 = vadd.f32 %v394, %v388
    %v396 = vadd.f32 %v395, %v389
    %v397 = vadd.f32 %v396, %v390
    %v398 = vrot.slane %v397, 4
    %v399 = vadd.f32 %v397, %v398
    %v400 = vrot.slane %v399, 2
    %v401 = vadd.f32 %v399, %v400
    %v402 = vrot.slane %v401, 1
    %v403 = vadd.f32 %v401, %v402
    %v404 = vmul.f32 %v382, 0.015625
    %v405 = vmul.f32 %v403, 0.015625
    %v406 = vmul.f32 %v404, %v404
    %v407 = vsub.f32 %v405, %v406
    %v408 = vmax.f32 %v407, 0.0
    %v409 = vadd.f32 %v408, 1e-05
    %v410 = vrsqrt.pop %v409
    %v411 = vmul.f32 %v82, %v410
    %v412 = vmul.f32 %v404, %v411
    %v413 = vsub.f32 %v83, %v412
    %v414 = vlaneseq
    %v415 = vshrl.u32 %v414, 7
    %v416 = vsub.s32 0, %v415
    %v417 = vrot.slane %v411, %v416
    %v418 = vmul.f32 %v332, %v417
    %v419 = vmul.f32 %v337, %v417
    %v420 = vmul.f32 %v342, %v417
    %v421 = vmul.f32 %v347, %v417
    %v422 = vmul.f32 %v352, %v417
    %v423 = vmul.f32 %v357, %v417
    %v424 = vmul.f32 %v362, %v417
    %v425 = vmul.f32 %v367, %v417
    %v426 = vlaneseq
    %v427 = vshrl.u32 %v426, 7
    %v428 = vsub.s32 0, %v427
    %v429 = vrot.slane %v413, %v428
    %v430 = vadd.f32 %v418, %v429
    %v431 = vadd.f32 %v419, %v429
    %v432 = vadd.f32 %v420, %v429
    %v433 = vadd.f32 %v421, %v429
    %v434 = vadd.f32 %v422, %v429
    %v435 = vadd.f32 %v423, %v429
    %v436 = vadd.f32 %v424, %v429
    %v437 = vadd.f32 %v425, %v429
    %v438 = vadd.f32 %v430, %v40
    %v439 = vadd.f32 %v431, %v41
    %v440 = vadd.f32 %v432, %v42
    %v441 = vadd.f32 %v433, %v43
    %v442 = vadd.f32 %v434, %v44
    %v443 = vadd.f32 %v435, %v45
    %v444 = vadd.f32 %v436, %v46
    %v445 = vadd.f32 %v437, %v47
    %v446 = vmax.f32 %v438, 0.0
    %v447 = vmax.f32 %v439, 0.0
    %v448 = vmax.f32 %v440, 0.0
    %v449 = vmax.f32 %v441, 0.0
    %v450 = vmax.f32 %v442, 0.0
    %v451 = vmax.f32 %v443, 0.0
    %v452 = vmax.f32 %v444, 0.0
    %v453 = vmax.f32 %v445, 0.0
    %454 = vst [vmem:[#allocation7] sm:$0xff] %v446
    %455 = vst [vmem:[#allocation7 + $0x8] sm:$0xff] %v447
    %456 = vst [vmem:[#allocation7 + $0x10] sm:$0xff] %v448
    %457 = vst [vmem:[#allocation7 + $0x18] sm:$0xff] %v449
    %458 = vst [vmem:[#allocation7 + $0x20] sm:$0xff] %v450
    %459 = vst [vmem:[#allocation7 + $0x28] sm:$0xff] %v451
    %460 = vst [vmem:[#allocation7 + $0x30] sm:$0xff] %v452
    %461 = vst [vmem:[#allocation7 + $0x38] sm:$0xff] %v453
    // Predicated region
    $region18: #{gcnresl_forward.1} parent=1 // pred_check
      _
    $region19: #{gcnresl_forward.1} parent=1 // pred_check_branch
      %463 = sbr.rel (0) target = $region21
    $region20: #{gcnresl_forward.1} parent=1 // pred_region
      %s465 = ssub.s32 1024, 1024
      %466 = vsyncadd [#allocation4], %s465
      %s467 = sshll.u32 [#allocation7], 4
      %s468 = int_to_ptr.vmem [resolvable:$true] %s467
      %473 = dma.vmem_to_hbm [thread:$0]  %s468, 1024, %s2, [#allocation4], 128, 128, 8
    $region21: #{gcnresl_forward.1} parent=1 // pred_fallthru
      _
    // Predicated region
    $region22: #{gcnresl_forward.1} parent=1 // pred_check
      _
    $region23: #{gcnresl_forward.1} parent=1 // pred_check_branch
      %475 = sbr.rel (0) target = $region25
    $region24: #{gcnresl_forward.1} parent=1 // pred_region
      %476 = dma.done [#allocation4], 1024
    $region25: #{gcnresl_forward.1} parent=1 // pred_fallthru
      _
    %477 = vsyncpa [#allocation3], 1
    %478 = vsyncpa [#allocation6], 1
    %479 = vsyncpa [#allocation4], 1

</llo_original>
